<compile_context>
chip_gen: v7x
topology: tpu7x:2x2x1
jax: 0.10.0
libtpu: 0.0.40
codegen_flags: <defaults>
</compile_context>

<pallas_src>
import functools

import jax
import jax.numpy as jnp
from jax.experimental import pallas as pl
from jax.experimental.pallas import tpu as pltpu


def _round_up(x, m):
    return ((x + m - 1) // m) * m


def _round_down(x, m):
    return (x // m) * m


def _choose_block_b(B, S, H, itemsize):
    """Pick the batch-block size TB (static, from shapes only)."""
    # Keep the double-buffered ctx tile comfortably inside the default scoped
    # VMEM budget on every generation (v7x: 64 MiB physical / 32 MiB scoped).
    ctx_budget = 12 * 1024 * 1024                       # bytes for 2x ctx buffers
    cap = max(8, ctx_budget // max(1, 2 * S * H * itemsize))
    tb = min(_round_up(B, 8), 512, max(8, _round_down(cap, 8)))
    if tb >= 256:
        # Multiples of 256 fill the v6e/v7x MXU rows for the (TB,H)@(H,H) linear.
        tb = _round_down(tb, 256)
    # Keep at least 2 grid steps when possible so v7x's 2 TensorCores share work.
    while tb > 8 and pl.cdiv(_round_up(B, 8), tb) < 2:
        tb = max(8, _round_down(tb // 2, 8))
    return tb
    # TODO(synk): for very large S*H a flash-style online-softmax reduction axis
    # over S (marked "arbitrary", last in the grid) would be needed.


def _cat_dot_attn_kernel(q_ref, ctx_ref, wt_ref, b_ref, out_ref, attn_ref):
    # q_ref   : (TB, H)      queries for TB batch rows
    # ctx_ref : (TB, S, H)   context for the same rows
    # wt_ref  : (2H, H)      linear weight, pre-transposed (y = x @ Wt + b)
    # b_ref   : (1, H)
    # out_ref : (TB, H)
    # attn_ref: (TB, S)
    H = q_ref.shape[-1]

    q = q_ref[...].astype(jnp.float32)        # (TB, H)
    ctx = ctx_ref[...].astype(jnp.float32)    # (TB, S, H)  (f32 math: safe on v5e too)

    # 1. scores[b, s] = <q[b], ctx[b, s]>  -- per-batch M=1 contraction, done as
    #    broadcast-multiply + lane reduction (no ctx transpose, no M=1 matmuls).
    scores = jnp.sum(q[:, None, :] * ctx, axis=-1)               # (TB, S)

    # 2. softmax over the seq axis.  Exact reciprocal: attn is a module output
    #    compared against softmax; flip to approx=True if only `out` is consumed.
    m = jnp.max(scores, axis=-1, keepdims=True)
    e = jnp.exp(scores - m)
    denom = jnp.sum(e, axis=-1, keepdims=True)
    attn = e * pl.reciprocal(denom, approx=False)                # (TB, S)

    # 3. prod[b, h] = sum_s attn[b, s] * ctx[b, s, h]  (sublane reduction).
    prod = jnp.sum(attn[:, :, None] * ctx, axis=1)               # (TB, H)

    # 4. tanh(cat([prod, q]) @ Wt + b) == tanh(prod @ Wt[:H] + q @ Wt[H:] + b).
    #    These are real (TB, H) @ (H, H) MXU matmuls.
    lin = (jnp.dot(prod, wt_ref[:H, :], preferred_element_type=jnp.float32)
           + jnp.dot(q, wt_ref[H:, :], preferred_element_type=jnp.float32)
           + b_ref[...].astype(jnp.float32))
    out_ref[...] = jnp.tanh(lin).astype(out_ref.dtype)
    attn_ref[...] = attn.astype(attn_ref.dtype)


def prepare_params(weight, bias):
    """Pre-transpose/reshape the nn.Linear parameters (hoistable out of the
    per-call path): weight (H, 2H) -> Wt (2H, H); bias (H,) -> (1, H)."""
    H = weight.shape[0]
    return weight.T.reshape(2 * H, H), bias.reshape(1, H)


@functools.partial(jax.jit, static_argnames=("block_b",))
def cat_dot_prod_attention(q, ctx, weight, bias, *, block_b=None):
    """q: (B, 1, H), ctx: (B, S, H), weight: (H, 2H) [PyTorch nn.Linear layout],
    bias: (H,).  Returns (out (B, 1, H), attn (B, 1, S))."""
    B, one, H = q.shape
    assert one == 1
    S = ctx.shape[1]

    wt, b2d = prepare_params(weight, bias)

    tb = block_b if block_b is not None else _choose_block_b(
        B, S, H, jnp.dtype(ctx.dtype).itemsize)
    Bp = _round_up(max(B, tb), tb)

    # Lane-dense 2-D slabs; zero-pad the batch so every block is full.
    q2d = q.reshape(B, H)
    if Bp != B:
        q2d = jnp.pad(q2d, ((0, Bp - B), (0, 0)))
        ctx = jnp.pad(ctx, ((0, Bp - B), (0, 0), (0, 0)))

    out_shapes = (
        jax.ShapeDtypeStruct((Bp, H), q.dtype),
        jax.ShapeDtypeStruct((Bp, S), q.dtype),
    )

    grid_spec = pltpu.PrefetchScalarGridSpec(
        num_scalar_prefetch=0,
        grid=(Bp // tb,),
        in_specs=[
            pl.BlockSpec((tb, H), lambda i: (i, 0)),        # q slab
            pl.BlockSpec((tb, S, H), lambda i: (i, 0, 0)),  # ctx slab
            pl.BlockSpec((2 * H, H), lambda i: (0, 0)),     # Wt (constant block)
            pl.BlockSpec((1, H), lambda i: (0, 0)),         # bias (constant block)
        ],
        out_specs=[
            pl.BlockSpec((tb, H), lambda i: (i, 0)),        # out slab
            pl.BlockSpec((tb, S), lambda i: (i, 0)),        # attn slab
        ],
    )

    out2d, attn2d = pl.pallas_call(
        _cat_dot_attn_kernel,
        out_shape=out_shapes,
        grid_spec=grid_spec,
        compiler_params=pltpu.CompilerParams(
            dimension_semantics=("parallel",)),
    )(q2d, ctx, wt, b2d)

    return out2d[:B].reshape(B, 1, H), attn2d[:B].reshape(B, 1, S)


def _reference(q, ctx, weight, bias):
    """Pure-JAX reference mirroring the PyTorch forward."""
    scores = jnp.einsum('bqh,bsh->bqs', q, ctx)
    attn = jax.nn.softmax(scores, axis=2)
    prod = jnp.einsum('bqs,bsh->bqh', attn, ctx)
    cat = jnp.concatenate([prod, q], axis=2)               # (B, 1, 2H)
    out = jnp.tanh(jnp.einsum('bqk,hk->bqh', cat, weight) + bias)
    return out, attn


if __name__ == "__main__":
    B, S, H = 2, 8, 32
    key = jax.random.PRNGKey(0)
    kq, kc, kw, kb = jax.random.split(key, 4)

    q = jax.random.normal(kq, (B, 1, H), dtype=jnp.float32)
    ctx = jax.random.normal(kc, (B, S, H), dtype=jnp.float32)

    # Deterministic parameter init (nn.Linear(2H, H): weight (H, 2H), bias (H,))
    bound = 1.0 / jnp.sqrt(2.0 * H)
    weight = jax.random.uniform(kw, (H, 2 * H), jnp.float32, -bound, bound)
    bias = jax.random.uniform(kb, (H,), jnp.float32, -bound, bound)

    out, attn = cat_dot_prod_attention(q, ctx, weight, bias)
    out = jax.block_until_ready(out)
    attn = jax.block_until_ready(attn)

    out_ref, attn_ref = _reference(q, ctx, weight, bias)
    assert jnp.allclose(out, out_ref, atol=1e-5, rtol=1e-5)
    assert jnp.allclose(attn, attn_ref, atol=1e-5, rtol=1e-5)

    print("KERNEL_OK")
</pallas_src>

<mosaic_0001>
module attributes {stable_mosaic.version = 11 : i64} {
  func.func @_cat_dot_attn_kernel(%arg0: i32, %arg1: memref<8x32xf32, #tpu.memory_space<vmem>>, %arg2: memref<8x8x32xf32, #tpu.memory_space<vmem>>, %arg3: memref<64x32xf32, #tpu.memory_space<vmem>>, %arg4: memref<1x32xf32, #tpu.memory_space<vmem>>, %arg5: memref<8x32xf32, #tpu.memory_space<vmem>>, %arg6: memref<8x8xf32, #tpu.memory_space<vmem>>) attributes {dimension_semantics = [#tpu.dimension_semantics<parallel>], iteration_bounds = array<i64: 1>, scalar_prefetch = 0 : i64, scratch_operands = 0 : i64, tpu.core_type = #tpu.core_type<tc>, window_params = [{transform_indices = @transform_0, window_bounds = array<i64: 8, 32>}, {transform_indices = @transform_1, window_bounds = array<i64: 8, 8, 32>}, {pipeline_mode = #tpu.pipeline_mode<synchronous>, transform_indices = @transform_2, window_bounds = array<i64: 64, 32>}, {pipeline_mode = #tpu.pipeline_mode<synchronous>, transform_indices = @transform_3, window_bounds = array<i64: 1, 32>}, {transform_indices = @transform_4, window_bounds = array<i64: 8, 32>}, {transform_indices = @transform_5, window_bounds = array<i64: 8, 8>}]} {
    %c0 = arith.constant 0 : index
    %c0_0 = arith.constant 0 : index
    %0 = vector.load %arg1[%c0, %c0_0] : memref<8x32xf32, #tpu.memory_space<vmem>>, vector<8x32xf32>
    %c0_1 = arith.constant 0 : index
    %c0_2 = arith.constant 0 : index
    %c0_3 = arith.constant 0 : index
    %1 = vector.load %arg2[%c0_1, %c0_2, %c0_3] : memref<8x8x32xf32, #tpu.memory_space<vmem>>, vector<8x8x32xf32>
    %2 = vector.shape_cast %0 : vector<8x32xf32> to vector<8x1x32xf32>
    %3 = vector.broadcast %2 : vector<8x1x32xf32> to vector<8x8x32xf32>
    %4 = arith.mulf %3, %1 : vector<8x8x32xf32>
    %cst = arith.constant dense<0.000000e+00> : vector<8x8xf32>
    %5 = vector.multi_reduction <add>, %4, %cst [2] : vector<8x8x32xf32> to vector<8x8xf32>
    %cst_4 = arith.constant dense<0xFF800000> : vector<8xf32>
    %6 = vector.multi_reduction <maximumf>, %5, %cst_4 [1] : vector<8x8xf32> to vector<8xf32>
    %7 = vector.shape_cast %6 : vector<8xf32> to vector<8x1xf32>
    %8 = vector.broadcast %7 : vector<8x1xf32> to vector<8x8xf32>
    %9 = arith.subf %5, %8 : vector<8x8xf32>
    %10 = math.exp %9 : vector<8x8xf32>
    %cst_5 = arith.constant dense<0.000000e+00> : vector<8xf32>
    %11 = vector.multi_reduction <add>, %10, %cst_5 [1] : vector<8x8xf32> to vector<8xf32>
    %12 = vector.shape_cast %11 : vector<8xf32> to vector<8x1xf32>
    %13 = tpu.reciprocal %12 : vector<8x1xf32> -> vector<8x1xf32>
    %14 = vector.broadcast %13 : vector<8x1xf32> to vector<8x8xf32>
    %15 = arith.mulf %10, %14 : vector<8x8xf32>
    %16 = vector.shape_cast %15 : vector<8x8xf32> to vector<8x8x1xf32>
    %17 = vector.broadcast %16 : vector<8x8x1xf32> to vector<8x8x32xf32>
    %18 = arith.mulf %17, %1 : vector<8x8x32xf32>
    %cst_6 = arith.constant dense<0.000000e+00> : vector<8x32xf32>
    %19 = vector.multi_reduction <add>, %18, %cst_6 [1] : vector<8x8x32xf32> to vector<8x32xf32>
    %c0_7 = arith.constant 0 : index
    %c0_8 = arith.constant 0 : index
    %20 = vector.load %arg3[%c0_7, %c0_8] : memref<64x32xf32, #tpu.memory_space<vmem>>, vector<32x32xf32>
    %cst_9 = arith.constant dense<0.000000e+00> : vector<8x32xf32>
    %21 = tpu.matmul %19, %20, %cst_9 {dimension_numbers = #tpu.dot_dimension_numbers<[1], [0], [0], [1], [0, 0, 1, 1], [], []>} : vector<8x32xf32>, vector<32x32xf32>, vector<8x32xf32> -> vector<8x32xf32>
    %c32 = arith.constant 32 : index
    %c0_10 = arith.constant 0 : index
    %22 = vector.load %arg3[%c32, %c0_10] : memref<64x32xf32, #tpu.memory_space<vmem>>, vector<32x32xf32>
    %cst_11 = arith.constant dense<0.000000e+00> : vector<8x32xf32>
    %23 = tpu.matmul %0, %22, %cst_11 {dimension_numbers = #tpu.dot_dimension_numbers<[1], [0], [0], [1], [0, 0, 1, 1], [], []>} : vector<8x32xf32>, vector<32x32xf32>, vector<8x32xf32> -> vector<8x32xf32>
    %24 = arith.addf %21, %23 : vector<8x32xf32>
    %c0_12 = arith.constant 0 : index
    %c0_13 = arith.constant 0 : index
    %25 = vector.load %arg4[%c0_12, %c0_13] : memref<1x32xf32, #tpu.memory_space<vmem>>, vector<1x32xf32>
    %26 = vector.broadcast %25 : vector<1x32xf32> to vector<8x32xf32>
    %27 = arith.addf %24, %26 : vector<8x32xf32>
    %28 = math.tanh %27 : vector<8x32xf32>
    %c0_14 = arith.constant 0 : index
    %c0_15 = arith.constant 0 : index
    %29 = vector.load %arg5[%c0_14, %c0_15] : memref<8x32xf32, #tpu.memory_space<vmem>>, vector<8x32xf32>
    tpu.vector_store %arg5[%c0_14, %c0_15], %28 {strides = array<i32>} : memref<8x32xf32, #tpu.memory_space<vmem>>, vector<8x32xf32>,
    %c0_16 = arith.constant 0 : index
    %c0_17 = arith.constant 0 : index
    %30 = vector.load %arg6[%c0_16, %c0_17] : memref<8x8xf32, #tpu.memory_space<vmem>>, vector<8x8xf32>
    tpu.vector_store %arg6[%c0_16, %c0_17], %15 {strides = array<i32>} : memref<8x8xf32, #tpu.memory_space<vmem>>, vector<8x8xf32>,
    return
  }
  func.func @transform_0(%arg0: i32) -> (i32, i32) {
    %c0_i32 = arith.constant 0 : i32
    %c0_i32_0 = arith.constant 0 : i32
    return %arg0, %c0_i32 : i32, i32
  }
  func.func @transform_1(%arg0: i32) -> (i32, i32, i32) {
    %c0_i32 = arith.constant 0 : i32
    %c0_i32_0 = arith.constant 0 : i32
    %c0_i32_1 = arith.constant 0 : i32
    return %arg0, %c0_i32, %c0_i32_0 : i32, i32, i32
  }
  func.func @transform_2(%arg0: i32) -> (i32, i32) {
    %c0_i32 = arith.constant 0 : i32
    %c0_i32_0 = arith.constant 0 : i32
    %c0_i32_1 = arith.constant 0 : i32
    return %c0_i32, %c0_i32_0 : i32, i32
  }
  func.func @transform_3(%arg0: i32) -> (i32, i32) {
    %c0_i32 = arith.constant 0 : i32
    %c0_i32_0 = arith.constant 0 : i32
    %c0_i32_1 = arith.constant 0 : i32
    return %c0_i32, %c0_i32_0 : i32, i32
  }
  func.func @transform_4(%arg0: i32) -> (i32, i32) {
    %c0_i32 = arith.constant 0 : i32
    %c0_i32_0 = arith.constant 0 : i32
    return %arg0, %c0_i32 : i32, i32
  }
  func.func @transform_5(%arg0: i32) -> (i32, i32) {
    %c0_i32 = arith.constant 0 : i32
    %c0_i32_0 = arith.constant 0 : i32
    return %arg0, %c0_i32 : i32, i32
  }
}

</mosaic_0001>

<llo_original>
// kernel: cat_dot_prod_attention.1
$region0: #{cat_dot_prod_attention.1}
  #allocation0 [shape = 'u32[]', space=smem, size = 0x4, offset = 0x4, fixed_abs, tag = 'smem constant byte address 0x4 - core index']
  #allocation1 [shape = 'u32[144,128]{1,0:T(1,128)}', space=vmem, size = 0x12000, scoped, tag = 'internal scratch']
  %s0 = inlined_call_operand.vmem [shape: f32[8,32], index: 0, kind: input, shape index: {}]
  %s1 = inlined_call_operand.vmem [shape: f32[8,8,32], index: 1, kind: input, shape index: {}]
  %s2 = inlined_call_operand.vmem [shape: f32[64,32], index: 2, kind: input, shape index: {}]
  %s3 = inlined_call_operand.vmem [shape: f32[1,32], index: 3, kind: input, shape index: {}]
  %s4 = inlined_call_operand.vmem [shape: f32[8,32], index: 4, kind: output, shape index: {0}]
  %s5 = inlined_call_operand.vmem [shape: f32[8,8], index: 5, kind: output, shape index: {1}]
  %6 = xla_tuple %s4, %s5
  %s7 = sld [smem:[#allocation0]]
  $region34: #{cat_dot_prod_attention.1} parent=0
    _
  %s9 = ssub.s32 1, %s7
  %s10 = scalar_select 0, %s9, %s7
  // Predicated region
  $region2: #{cat_dot_prod_attention.1} parent=0 // pred_check
    _
  $region3: #{cat_dot_prod_attention.1} parent=0 // pred_check_branch
    %12 = sbr.rel (0) target = $region5
  $region4: #{cat_dot_prod_attention.1} parent=0 // pred_region
    _
  $region5: #{cat_dot_prod_attention.1} parent=0 // pred_fallthru
    _
  // Predicated region
  $region6: #{cat_dot_prod_attention.1} parent=0 // pred_check
    _
  $region7: #{cat_dot_prod_attention.1} parent=0 // pred_check_branch
    %14 = sbr.rel (0) target = $region9
  $region8: #{cat_dot_prod_attention.1} parent=0 // pred_region
    _
  $region9: #{cat_dot_prod_attention.1} parent=0 // pred_fallthru
    _
  // Predicated region
  $region10: #{cat_dot_prod_attention.1} parent=0 // pred_check
    _
  $region11: #{cat_dot_prod_attention.1} parent=0 // pred_check_branch
    %16 = sbr.rel (0) target = $region13
  $region12: #{cat_dot_prod_attention.1} parent=0 // pred_region
    _
  $region13: #{cat_dot_prod_attention.1} parent=0 // pred_fallthru
    _
  // Predicated region
  $region14: #{cat_dot_prod_attention.1} parent=0 // pred_check
    _
  $region15: #{cat_dot_prod_attention.1} parent=0 // pred_check_branch
    %18 = sbr.rel (0) target = $region17
  $region16: #{cat_dot_prod_attention.1} parent=0 // pred_region
    _
  $region17: #{cat_dot_prod_attention.1} parent=0 // pred_fallthru
    _
  %v19 = vld [vmem:[%s0] sm:$0xff]
  %v20 = vld [vmem:[%s1] sm:$0xff]
  %v21 = vld [vmem:[%s1 + $0x8] sm:$0xff]
  %v22 = vld [vmem:[%s1 + $0x10] sm:$0xff]
  %v23 = vld [vmem:[%s1 + $0x18] sm:$0xff]
  %v24 = vld [vmem:[%s1 + $0x20] sm:$0xff]
  %v25 = vld [vmem:[%s1 + $0x28] sm:$0xff]
  %v26 = vld [vmem:[%s1 + $0x30] sm:$0xff]
  %v27 = vld [vmem:[%s1 + $0x38] sm:$0xff]
  %v29 = vcombine.high %v19, %v19
  %v31 = vunpack.c.l.s4 1966171168
  %v32 = vunpack.c.0.s8 %v31
  %v33 = vlaneseq
  %v34 = vshrl.u32 %v33, 7
  %v35 = vsub.s32 %v32, %v34
  %v36 = vrot.slane %v19, %v35
  %v38 = vunpack.c.l.s4 1966171168
  %v39 = vunpack.c.0.s8 %v38
  %v40 = vlaneseq
  %v41 = vshrl.u32 %v40, 7
  %v42 = vsub.s32 %v39, %v41
  %v43 = vrot.slane %v29, %v42
  %v44 = vcombine.high %v36, %v36
  %v45 = vcombine.high %v43, %v43
  %v47 = vunpack.c.l.s4 1966171168
  %v48 = vunpack.c.0.s8 %v47
  %v49 = vlaneseq
  %v50 = vshrl.u32 %v49, 7
  %v51 = vsub.s32 %v48, %v50
  %v52 = vrot.slane %v36, %v51
  %v54 = vunpack.c.l.s4 1966171168
  %v55 = vunpack.c.0.s8 %v54
  %v56 = vlaneseq
  %v57 = vshrl.u32 %v56, 7
  %v58 = vsub.s32 %v55, %v57
  %v59 = vrot.slane %v43, %v58
  %v61 = vunpack.c.l.s4 1966171168
  %v62 = vunpack.c.0.s8 %v61
  %v63 = vlaneseq
  %v64 = vshrl.u32 %v63, 7
  %v65 = vsub.s32 %v62, %v64
  %v66 = vrot.slane %v44, %v65
  %v68 = vunpack.c.l.s4 1966171168
  %v69 = vunpack.c.0.s8 %v68
  %v70 = vlaneseq
  %v71 = vshrl.u32 %v70, 7
  %v72 = vsub.s32 %v69, %v71
  %v73 = vrot.slane %v45, %v72
  %v74 = vcombine.high %v52, %v52
  %v75 = vcombine.high %v59, %v59
  %v76 = vcombine.high %v66, %v66
  %v77 = vcombine.high %v73, %v73
  %v78 = vlaneseq
  %v79 = vshrl.u32 %v78, 7
  %v80 = vsub.s32 0, %v79
  %v81 = vrot.slane %v52, %v80
  %v82 = vlaneseq
  %v83 = vshrl.u32 %v82, 7
  %v84 = vsub.s32 0, %v83
  %v85 = vrot.slane %v66, %v84
  %v86 = vlaneseq
  %v87 = vshrl.u32 %v86, 7
  %v88 = vsub.s32 0, %v87
  %v89 = vrot.slane %v74, %v88
  %v90 = vlaneseq
  %v91 = vshrl.u32 %v90, 7
  %v92 = vsub.s32 0, %v91
  %v93 = vrot.slane %v76, %v92
  %v94 = vlaneseq
  %v95 = vshrl.u32 %v94, 7
  %v96 = vsub.s32 0, %v95
  %v97 = vrot.slane %v59, %v96
  %v98 = vlaneseq
  %v99 = vshrl.u32 %v98, 7
  %v100 = vsub.s32 0, %v99
  %v101 = vrot.slane %v73, %v100
  %v102 = vlaneseq
  %v103 = vshrl.u32 %v102, 7
  %v104 = vsub.s32 0, %v103
  %v105 = vrot.slane %v75, %v104
  %v106 = vlaneseq
  %v107 = vshrl.u32 %v106, 7
  %v108 = vsub.s32 0, %v107
  %v109 = vrot.slane %v77, %v108
  %v118 = vmul.f32 %v81, %v20
  %v119 = vmul.f32 %v85, %v21
  %v120 = vmul.f32 %v89, %v22
  %v121 = vmul.f32 %v93, %v23
  %v122 = vmul.f32 %v97, %v24
  %v123 = vmul.f32 %v101, %v25
  %v124 = vmul.f32 %v105, %v26
  %v125 = vmul.f32 %v109, %v27
  %vm126 = vcmask 261120
  %v127 = vsel %vm126, %v118, 0.0
  %128 = vadd.xlane.f32.xlu0 %v127
  %v129 = vpop.xlane.xlu0 %128
  %v130 = vsel %vm126, %v119, 0.0
  %131 = vadd.xlane.f32.xlu0 %v130
  %v132 = vpop.xlane.xlu0 %131
  %v133 = vsel %vm126, %v120, 0.0
  %134 = vadd.xlane.f32.xlu0 %v133
  %v135 = vpop.xlane.xlu0 %134
  %v136 = vsel %vm126, %v121, 0.0
  %137 = vadd.xlane.f32.xlu0 %v136
  %v138 = vpop.xlane.xlu0 %137
  %v139 = vsel %vm126, %v122, 0.0
  %140 = vadd.xlane.f32.xlu0 %v139
  %v141 = vpop.xlane.xlu0 %140
  %v142 = vsel %vm126, %v123, 0.0
  %143 = vadd.xlane.f32.xlu0 %v142
  %v144 = vpop.xlane.xlu0 %143
  %v145 = vsel %vm126, %v124, 0.0
  %146 = vadd.xlane.f32.xlu0 %v145
  %v147 = vpop.xlane.xlu0 %146
  %v148 = vsel %vm126, %v125, 0.0
  %149 = vadd.xlane.f32.xlu0 %v148
  %v150 = vpop.xlane.xlu0 %149
  %v159 = vlaneseq
  %v160 = vand.u32 %v159, 127
  %v161 = vlaneseq
  %v162 = vshrl.u32 %v161, 7
  %v163 = vsub.s32 %v160, %v162
  %v164 = vrot.slane %v129, %v163
  %v165 = vlaneseq
  %v166 = vshrl.u32 %v165, 7
  %v167 = vsub.s32 %v160, %v166
  %v168 = vrot.slane %v132, %v167
  %v169 = vlaneseq
  %v170 = vshrl.u32 %v169, 7
  %v171 = vsub.s32 %v160, %v170
  %v172 = vrot.slane %v135, %v171
  %v173 = vlaneseq
  %v174 = vshrl.u32 %v173, 7
  %v175 = vsub.s32 %v160, %v174
  %v176 = vrot.slane %v138, %v175
  %v177 = vlaneseq
  %v178 = vshrl.u32 %v177, 7
  %v179 = vsub.s32 %v160, %v178
  %v180 = vrot.slane %v141, %v179
  %v181 = vlaneseq
  %v182 = vshrl.u32 %v181, 7
  %v183 = vsub.s32 %v160, %v182
  %v184 = vrot.slane %v144, %v183
  %v185 = vlaneseq
  %v186 = vshrl.u32 %v185, 7
  %v187 = vsub.s32 %v160, %v186
  %v188 = vrot.slane %v147, %v187
  %v189 = vlaneseq
  %v190 = vshrl.u32 %v189, 7
  %v191 = vsub.s32 %v160, %v190
  %v192 = vrot.slane %v150, %v191
  %vm193 = vcmask 1041409
  %v194 = vsel %vm193, %v168, %v164
  %vm195 = vcmask 1042434
  %v196 = vsel %vm195, %v172, %v194
  %vm197 = vcmask 1043459
  %v198 = vsel %vm197, %v176, %v196
  %vm199 = vcmask 1044484
  %v200 = vsel %vm199, %v180, %v198
  %vm201 = vcmask 1045509
  %v202 = vsel %vm201, %v184, %v200
  %vm203 = vcmask 1046534
  %v204 = vsel %vm203, %v188, %v202
  %vm205 = vcmask 1047559
  %v206 = vsel %vm205, %v192, %v204
  %vm208 = vcmask 64512
  %v209 = vsel %vm208, %v206, -inf
  %210 = vmax.xlane.f32.xlu0 %v209
  %v211 = vpop.xlane.xlu0 %210
  %v213 = vlaneseq
  %v214 = vshrl.u32 %v213, 7
  %v215 = vsub.s32 0, %v214
  %v216 = vrot.slane %v211, %v215
  %v217 = vlaneseq
  %v218 = vshrl.u32 %v217, 7
  %v219 = vsub.s32 1, %v218
  %v220 = vrot.slane %v211, %v219
  %v221 = vlaneseq
  %v222 = vshrl.u32 %v221, 7
  %v223 = vsub.s32 2, %v222
  %v224 = vrot.slane %v211, %v223
  %v225 = vlaneseq
  %v226 = vshrl.u32 %v225, 7
  %v227 = vsub.s32 3, %v226
  %v228 = vrot.slane %v211, %v227
  %v229 = vlaneseq
  %v230 = vshrl.u32 %v229, 7
  %v231 = vsub.s32 4, %v230
  %v232 = vrot.slane %v211, %v231
  %v233 = vlaneseq
  %v234 = vshrl.u32 %v233, 7
  %v235 = vsub.s32 5, %v234
  %v236 = vrot.slane %v211, %v235
  %v237 = vlaneseq
  %v238 = vshrl.u32 %v237, 7
  %v239 = vsub.s32 6, %v238
  %v240 = vrot.slane %v211, %v239
  %v241 = vlaneseq
  %v242 = vshrl.u32 %v241, 7
  %v243 = vsub.s32 7, %v242
  %v244 = vrot.slane %v211, %v243
  %v253 = vsub.f32 %v129, %v216
  %v254 = vsub.f32 %v132, %v220
  %v255 = vsub.f32 %v135, %v224
  %v256 = vsub.f32 %v138, %v228
  %v257 = vsub.f32 %v141, %v232
  %v258 = vsub.f32 %v144, %v236
  %v259 = vsub.f32 %v147, %v240
  %v260 = vsub.f32 %v150, %v244
  %v261 = vmul.f32 %v253, 1.442695
  %v262 = vpow.pop %v261
  %v263 = vmul.f32 %v254, 1.442695
  %v264 = vpow.pop %v263
  %v265 = vmul.f32 %v255, 1.442695
  %v266 = vpow.pop %v265
  %v267 = vmul.f32 %v256, 1.442695
  %v268 = vpow.pop %v267
  %v269 = vmul.f32 %v257, 1.442695
  %v270 = vpow.pop %v269
  %v271 = vmul.f32 %v258, 1.442695
  %v272 = vpow.pop %v271
  %v273 = vmul.f32 %v259, 1.442695
  %v274 = vpow.pop %v273
  %v275 = vmul.f32 %v260, 1.442695
  %v276 = vpow.pop %v275
  %285 = vset.pattern.permute.xlu0 0
  %286 = vperm.xlu0 %285, %v262
  %v287 = vpop.permute.xlu0 %286
  %288 = vset.pattern.permute.xlu0 0
  %289 = vperm.xlu0 %288, %v264
  %v290 = vpop.permute.xlu0 %289
  %291 = vset.pattern.permute.xlu0 0
  %292 = vperm.xlu0 %291, %v266
  %v293 = vpop.permute.xlu0 %292
  %294 = vset.pattern.permute.xlu0 0
  %295 = vperm.xlu0 %294, %v268
  %v296 = vpop.permute.xlu0 %295
  %297 = vset.pattern.permute.xlu0 0
  %298 = vperm.xlu0 %297, %v270
  %v299 = vpop.permute.xlu0 %298
  %300 = vset.pattern.permute.xlu0 0
  %301 = vperm.xlu0 %300, %v272
  %v302 = vpop.permute.xlu0 %301
  %303 = vset.pattern.permute.xlu0 0
  %304 = vperm.xlu0 %303, %v274
  %v305 = vpop.permute.xlu0 %304
  %306 = vset.pattern.permute.xlu0 0
  %307 = vperm.xlu0 %306, %v276
  %v308 = vpop.permute.xlu0 %307
  %v309 = vlaneseq
  %v310 = vshrl.u32 %v309, 7
  %v311 = vsub.s32 %v160, %v310
  %v312 = vrot.slane %v287, %v311
  %v313 = vlaneseq
  %v314 = vshrl.u32 %v313, 7
  %v315 = vsub.s32 %v160, %v314
  %v316 = vrot.slane %v290, %v315
  %v317 = vlaneseq
  %v318 = vshrl.u32 %v317, 7
  %v319 = vsub.s32 %v160, %v318
  %v320 = vrot.slane %v293, %v319
  %v321 = vlaneseq
  %v322 = vshrl.u32 %v321, 7
  %v323 = vsub.s32 %v160, %v322
  %v324 = vrot.slane %v296, %v323
  %v325 = vlaneseq
  %v326 = vshrl.u32 %v325, 7
  %v327 = vsub.s32 %v160, %v326
  %v328 = vrot.slane %v299, %v327
  %v329 = vlaneseq
  %v330 = vshrl.u32 %v329, 7
  %v331 = vsub.s32 %v160, %v330
  %v332 = vrot.slane %v302, %v331
  %v333 = vlaneseq
  %v334 = vshrl.u32 %v333, 7
  %v335 = vsub.s32 %v160, %v334
  %v336 = vrot.slane %v305, %v335
  %v337 = vlaneseq
  %v338 = vshrl.u32 %v337, 7
  %v339 = vsub.s32 %v160, %v338
  %v340 = vrot.slane %v308, %v339
  %v341 = vsel %vm193, %v316, %v312
  %v342 = vsel %vm195, %v320, %v341
  %v343 = vsel %vm197, %v324, %v342
  %v344 = vsel %vm199, %v328, %v343
  %v345 = vsel %vm201, %v332, %v344
  %v346 = vsel %vm203, %v336, %v345
  %v347 = vsel %vm205, %v340, %v346
  %v349 = vsel %vm208, %v347, 0.0
  %350 = vadd.xlane.f32.xlu0 %v349
  %v351 = vpop.xlane.xlu0 %350
  %v352 = vrcp.pop %v351
  %v354 = vlaneseq
  %v355 = vshrl.u32 %v354, 7
  %v356 = vsub.s32 0, %v355
  %v357 = vrot.slane %v352, %v356
  %v358 = vlaneseq
  %v359 = vshrl.u32 %v358, 7
  %v360 = vsub.s32 1, %v359
  %v361 = vrot.slane %v352, %v360
  %v362 = vlaneseq
  %v363 = vshrl.u32 %v362, 7
  %v364 = vsub.s32 2, %v363
  %v365 = vrot.slane %v352, %v364
  %v366 = vlaneseq
  %v367 = vshrl.u32 %v366, 7
  %v368 = vsub.s32 3, %v367
  %v369 = vrot.slane %v352, %v368
  %v370 = vlaneseq
  %v371 = vshrl.u32 %v370, 7
  %v372 = vsub.s32 4, %v371
  %v373 = vrot.slane %v352, %v372
  %v374 = vlaneseq
  %v375 = vshrl.u32 %v374, 7
  %v376 = vsub.s32 5, %v375
  %v377 = vrot.slane %v352, %v376
  %v378 = vlaneseq
  %v379 = vshrl.u32 %v378, 7
  %v380 = vsub.s32 6, %v379
  %v381 = vrot.slane %v352, %v380
  %v382 = vlaneseq
  %v383 = vshrl.u32 %v382, 7
  %v384 = vsub.s32 7, %v383
  %v385 = vrot.slane %v352, %v384
  %v394 = vmul.f32 %v262, %v357
  %v395 = vmul.f32 %v264, %v361
  %v396 = vmul.f32 %v266, %v365
  %v397 = vmul.f32 %v268, %v369
  %v398 = vmul.f32 %v270, %v373
  %v399 = vmul.f32 %v272, %v377
  %v400 = vmul.f32 %v274, %v381
  %v401 = vmul.f32 %v276, %v385
  %403 = vset.pattern.permute.xlu0 0
  %404 = vperm.xlu0 %403, %v394
  %v405 = vpop.permute.xlu0 %404
  %408 = vset.pattern.permute.xlu0 0
  %409 = vperm.xlu0 %408, %v395
  %v410 = vpop.permute.xlu0 %409
  %413 = vset.pattern.permute.xlu0 0
  %414 = vperm.xlu0 %413, %v396
  %v415 = vpop.permute.xlu0 %414
  %418 = vset.pattern.permute.xlu0 0
  %419 = vperm.xlu0 %418, %v397
  %v420 = vpop.permute.xlu0 %419
  %423 = vset.pattern.permute.xlu0 0
  %424 = vperm.xlu0 %423, %v398
  %v425 = vpop.permute.xlu0 %424
  %428 = vset.pattern.permute.xlu0 0
  %429 = vperm.xlu0 %428, %v399
  %v430 = vpop.permute.xlu0 %429
  %433 = vset.pattern.permute.xlu0 0
  %434 = vperm.xlu0 %433, %v400
  %v435 = vpop.permute.xlu0 %434
  %438 = vset.pattern.permute.xlu0 0
  %439 = vperm.xlu0 %438, %v401
  %v440 = vpop.permute.xlu0 %439
  %v442 = vmul.f32 %v405, %v20
  %v443 = vmul.f32 %v410, %v21
  %v444 = vmul.f32 %v415, %v22
  %v445 = vmul.f32 %v420, %v23
  %v446 = vmul.f32 %v425, %v24
  %v447 = vmul.f32 %v430, %v25
  %v448 = vmul.f32 %v435, %v26
  %v449 = vmul.f32 %v440, %v27
  %v450 = vsel %vm126, %v442, 0.0
  %v451 = vrot.slane %v450, 4
  %v452 = vadd.f32 %v450, %v451
  %v453 = vrot.slane %v452, 2
  %v454 = vadd.f32 %v452, %v453
  %v455 = vrot.slane %v454, 1
  %v456 = vadd.f32 %v454, %v455
  %v457 = vsel %vm126, %v443, 0.0
  %v458 = vrot.slane %v457, 4
  %v459 = vadd.f32 %v457, %v458
  %v460 = vrot.slane %v459, 2
  %v461 = vadd.f32 %v459, %v460
  %v462 = vrot.slane %v461, 1
  %v463 = vadd.f32 %v461, %v462
  %v464 = vsel %vm126, %v444, 0.0
  %v465 = vrot.slane %v464, 4
  %v466 = vadd.f32 %v464, %v465
  %v467 = vrot.slane %v466, 2
  %v468 = vadd.f32 %v466, %v467
  %v469 = vrot.slane %v468, 1
  %v470 = vadd.f32 %v468, %v469
  %v471 = vsel %vm126, %v445, 0.0
  %v472 = vrot.slane %v471, 4
  %v473 = vadd.f32 %v471, %v472
  %v474 = vrot.slane %v473, 2
  %v475 = vadd.f32 %v473, %v474
  %v476 = vrot.slane %v475, 1
  %v477 = vadd.f32 %v475, %v476
  %v478 = vsel %vm126, %v446, 0.0
  %v479 = vrot.slane %v478, 4
  %v480 = vadd.f32 %v478, %v479
  %v481 = vrot.slane %v480, 2
  %v482 = vadd.f32 %v480, %v481
  %v483 = vrot.slane %v482, 1
  %v484 = vadd.f32 %v482, %v483
  %v485 = vsel %vm126, %v447, 0.0
  %v486 = vrot.slane %v485, 4
  %v487 = vadd.f32 %v485, %v486
  %v488 = vrot.slane %v487, 2
  %v489 = vadd.f32 %v487, %v488
  %v490 = vrot.slane %v489, 1
  %v491 = vadd.f32 %v489, %v490
  %v492 = vsel %vm126, %v448, 0.0
  %v493 = vrot.slane %v492, 4
  %v494 = vadd.f32 %v492, %v493
  %v495 = vrot.slane %v494, 2
  %v496 = vadd.f32 %v494, %v495
  %v497 = vrot.slane %v496, 1
  %v498 = vadd.f32 %v496, %v497
  %v499 = vsel %vm126, %v449, 0.0
  %v500 = vrot.slane %v499, 4
  %v501 = vadd.f32 %v499, %v500
  %v502 = vrot.slane %v501, 2
  %v503 = vadd.f32 %v501, %v502
  %v504 = vrot.slane %v503, 1
  %v505 = vadd.f32 %v503, %v504
  %v506 = vld [vmem:[%s2] sm:$0xff]
  %v507 = vld [vmem:[%s2 + $0x8] sm:$0xff]
  %v508 = vld [vmem:[%s2 + $0x10] sm:$0xff]
  %v509 = vld [vmem:[%s2 + $0x18] sm:$0xff]
  %v510 = vld [vmem:[%s2 + $0x20] sm:$0xff]
  %v511 = vld [vmem:[%s2 + $0x28] sm:$0xff]
  %v512 = vld [vmem:[%s2 + $0x30] sm:$0xff]
  %v513 = vld [vmem:[%s2 + $0x38] sm:$0xff]
  %v514 = vsel %vm126, %v19, 0
  %516 = vmatprep.subr.mxu0 0.0
  %517 = vmatpush1.msra.mxu0 %v510
  %518 = vmatprep.subr.mxu0 0.0
  %519 = vmatpush1.msra.mxu0 %v511
  %520 = vmatprep.subr.mxu0 0.0
  %521 = vmatpush1.msra.mxu0 %v512
  %522 = vmatprep.subr.mxu0 0.0
  %523 = vmatpush1.msra.mxu0 %v513
  %524 = vmatprep.subr.mxu0 0.0
  %525 = vmatpush1.msra.mxu0 0.0
  %526 = vmatprep.subr.mxu0 0.0
  %527 = vmatpush1.msra.mxu0 0.0
  %528 = vmatprep.subr.mxu0 0.0
  %529 = vmatpush1.msra.mxu0 0.0
  %530 = vmatprep.subr.mxu0 0.0
  %531 = vmatpush1.msra.mxu0 0.0
  %532 = vmatprep.subr.mxu0 0.0
  %533 = vmatpush1.msra.mxu0 0.0
  %534 = vmatprep.subr.mxu0 0.0
  %535 = vmatpush1.msra.mxu0 0.0
  %536 = vmatprep.subr.mxu0 0.0
  %537 = vmatpush1.msra.mxu0 0.0
  %538 = vmatprep.subr.mxu0 0.0
  %539 = vmatpush1.msra.mxu0 0.0
  %540 = vmatprep.subr.mxu0 0.0
  %541 = vmatpush1.msra.mxu0 0.0
  %542 = vmatprep.subr.mxu0 0.0
  %543 = vmatpush1.msra.mxu0 0.0
  %544 = vmatprep.subr.mxu0 0.0
  %545 = vmatpush1.msra.mxu0 0.0
  %546 = vmatprep.subr.mxu0 0.0
  %547 = vmatpush1.msra.mxu0 0.0
  %548 = vmatprep.subr.mxu0 0.0
  %549 = vmatpush1.msra.mxu0 0.0
  %550 = vmatprep.subr.mxu0 0.0
  %551 = vmatpush1.msra.mxu0 0.0
  %552 = vmatprep.subr.mxu0 0.0
  %553 = vmatpush1.msra.mxu0 0.0
  %554 = vmatprep.subr.mxu0 0.0
  %555 = vmatpush1.msra.mxu0 0.0
  %556 = vmatprep.subr.mxu0 0.0
  %557 = vmatpush1.msra.mxu0 0.0
  %558 = vmatprep.subr.mxu0 0.0
  %559 = vmatpush1.msra.mxu0 0.0
  %560 = vmatprep.subr.mxu0 0.0
  %561 = vmatpush1.msra.mxu0 0.0
  %562 = vmatprep.subr.mxu0 0.0
  %563 = vmatpush1.msra.mxu0 0.0
  %564 = vmatprep.subr.mxu0 0.0
  %565 = vmatpush1.msra.mxu0 0.0
  %566 = vmatprep.subr.mxu0 0.0
  %567 = vmatpush1.msra.mxu0 0.0
  %568 = vmatprep.subr.mxu0 0.0
  %569 = vmatpush1.msra.mxu0 0.0
  %570 = vmatprep.subr.mxu0 0.0
  %571 = vmatpush1.msra.mxu0 0.0
  %572 = vmatprep.subr.mxu0 0.0
  %573 = vmatpush1.msra.mxu0 0.0
  %574 = vmatprep.subr.mxu0 0.0
  %575 = vmatpush1.msra.mxu0 0.0
  %576 = vmatprep.subr.mxu0 0.0
  %577 = vmatpush1.msra.mxu0 0.0
  %578 = vmatprep.subr.mxu0 0.0
  %579 = vmatpush1.msra.mxu0 0.0
  %580 = vmatprep.mubr.f32.mxu0 0.0
  %581 = vmatmul.mubr.f32.gmra.mrb[0].mxu0 %v514
  %v582 = vpop.f32.mrb[0].mxu0
  %v583 = vadd.f32 0.0, %v582
  %v584 = vpop.f32.mrb[0].mxu0
  %585 = vdwg.mxu0
  %v594 = vsel %vm193, %v463, %v456
  %v595 = vsel %vm195, %v470, %v594
  %v596 = vsel %vm197, %v477, %v595
  %v597 = vsel %vm199, %v484, %v596
  %v598 = vsel %vm201, %v491, %v597
  %v599 = vsel %vm203, %v498, %v598
  %v600 = vsel %vm205, %v505, %v599
  %v601 = vsel %vm126, %v600, 0
  %603 = vmatprep.subr.mxu0 0.0
  %604 = vmatpush1.msra.mxu0 %v506
  %605 = vmatprep.subr.mxu0 0.0
  %606 = vmatpush1.msra.mxu0 %v507
  %607 = vmatprep.subr.mxu0 0.0
  %608 = vmatpush1.msra.mxu0 %v508
  %609 = vmatprep.subr.mxu0 0.0
  %610 = vmatpush1.msra.mxu0 %v509
  %611 = vmatprep.subr.mxu0 0.0
  %612 = vmatpush1.msra.mxu0 0.0
  %613 = vmatprep.subr.mxu0 0.0
  %614 = vmatpush1.msra.mxu0 0.0
  %615 = vmatprep.subr.mxu0 0.0
  %616 = vmatpush1.msra.mxu0 0.0
  %617 = vmatprep.subr.mxu0 0.0
  %618 = vmatpush1.msra.mxu0 0.0
  %619 = vmatprep.subr.mxu0 0.0
  %620 = vmatpush1.msra.mxu0 0.0
  %621 = vmatprep.subr.mxu0 0.0
  %622 = vmatpush1.msra.mxu0 0.0
  %623 = vmatprep.subr.mxu0 0.0
  %624 = vmatpush1.msra.mxu0 0.0
  %625 = vmatprep.subr.mxu0 0.0
  %626 = vmatpush1.msra.mxu0 0.0
  %627 = vmatprep.subr.mxu0 0.0
  %628 = vmatpush1.msra.mxu0 0.0
  %629 = vmatprep.subr.mxu0 0.0
  %630 = vmatpush1.msra.mxu0 0.0
  %631 = vmatprep.subr.mxu0 0.0
  %632 = vmatpush1.msra.mxu0 0.0
  %633 = vmatprep.subr.mxu0 0.0
  %634 = vmatpush1.msra.mxu0 0.0
  %635 = vmatprep.subr.mxu0 0.0
  %636 = vmatpush1.msra.mxu0 0.0
  %637 = vmatprep.subr.mxu0 0.0
  %638 = vmatpush1.msra.mxu0 0.0
  %639 = vmatprep.subr.mxu0 0.0
  %640 = vmatpush1.msra.mxu0 0.0
  %641 = vmatprep.subr.mxu0 0.0
  %642 = vmatpush1.msra.mxu0 0.0
  %643 = vmatprep.subr.mxu0 0.0
  %644 = vmatpush1.msra.mxu0 0.0
  %645 = vmatprep.subr.mxu0 0.0
  %646 = vmatpush1.msra.mxu0 0.0
  %647 = vmatprep.subr.mxu0 0.0
  %648 = vmatpush1.msra.mxu0 0.0
  %649 = vmatprep.subr.mxu0 0.0
  %650 = vmatpush1.msra.mxu0 0.0
  %651 = vmatprep.subr.mxu0 0.0
  %652 = vmatpush1.msra.mxu0 0.0
  %653 = vmatprep.subr.mxu0 0.0
  %654 = vmatpush1.msra.mxu0 0.0
  %655 = vmatprep.subr.mxu0 0.0
  %656 = vmatpush1.msra.mxu0 0.0
  %657 = vmatprep.subr.mxu0 0.0
  %658 = vmatpush1.msra.mxu0 0.0
  %659 = vmatprep.subr.mxu0 0.0
  %660 = vmatpush1.msra.mxu0 0.0
  %661 = vmatprep.subr.mxu0 0.0
  %662 = vmatpush1.msra.mxu0 0.0
  %663 = vmatprep.subr.mxu0 0.0
  %664 = vmatpush1.msra.mxu0 0.0
  %665 = vmatprep.subr.mxu0 0.0
  %666 = vmatpush1.msra.mxu0 0.0
  %667 = vmatprep.mubr.f32.mxu0 0.0
  %668 = vmatmul.mubr.f32.gmra.mrb[0].mxu0 %v601
  %v669 = vpop.f32.mrb[0].mxu0
  %v670 = vadd.f32 %v583, %v669
  %v671 = vpop.f32.mrb[0].mxu0
  %672 = vdwg.mxu0
  %v673 = vld [vmem:[%s3] sm:$0x1]
  %v675 = vlaneseq
  %v676 = vshrl.u32 %v675, 7
  %v677 = vsub.s32 0, %v676
  %v678 = vrot.slane %v673, %v677
  %v680 = vadd.f32 %v670, %v678
  %v681 = vtanh.pop %v680
  %682 = vst.msk [vmem:[%s4] sm:$0xff] %vm126, %v681
  %v683 = vlaneseq
  %v684 = vshrl.u32 %v683, 7
  %v685 = vsub.s32 %v160, %v684
  %v686 = vrot.slane %v405, %v685
  %v687 = vlaneseq
  %v688 = vshrl.u32 %v687, 7
  %v689 = vsub.s32 %v160, %v688
  %v690 = vrot.slane %v410, %v689
  %v691 = vlaneseq
  %v692 = vshrl.u32 %v691, 7
  %v693 = vsub.s32 %v160, %v692
  %v694 = vrot.slane %v415, %v693
  %v695 = vlaneseq
  %v696 = vshrl.u32 %v695, 7
  %v697 = vsub.s32 %v160, %v696
  %v698 = vrot.slane %v420, %v697
  %v699 = vlaneseq
  %v700 = vshrl.u32 %v699, 7
  %v701 = vsub.s32 %v160, %v700
  %v702 = vrot.slane %v425, %v701
  %v703 = vlaneseq
  %v704 = vshrl.u32 %v703, 7
  %v705 = vsub.s32 %v160, %v704
  %v706 = vrot.slane %v430, %v705
  %v707 = vlaneseq
  %v708 = vshrl.u32 %v707, 7
  %v709 = vsub.s32 %v160, %v708
  %v710 = vrot.slane %v435, %v709
  %v711 = vlaneseq
  %v712 = vshrl.u32 %v711, 7
  %v713 = vsub.s32 %v160, %v712
  %v714 = vrot.slane %v440, %v713
  %v715 = vsel %vm193, %v690, %v686
  %v716 = vsel %vm195, %v694, %v715
  %v717 = vsel %vm197, %v698, %v716
  %v718 = vsel %vm199, %v702, %v717
  %v719 = vsel %vm201, %v706, %v718
  %v720 = vsel %vm203, %v710, %v719
  %v721 = vsel %vm205, %v714, %v720
  %723 = vst.msk [vmem:[%s5] sm:$0xff] %vm208, %v721
  // Predicated region
  $region18: #{cat_dot_prod_attention.1} parent=0 // pred_check
    _
  $region19: #{cat_dot_prod_attention.1} parent=0 // pred_check_branch
    %725 = sbr.rel (0) target = $region21
  $region20: #{cat_dot_prod_attention.1} parent=0 // pred_region
    _
  $region21: #{cat_dot_prod_attention.1} parent=0 // pred_fallthru
    _
  // Predicated region
  $region22: #{cat_dot_prod_attention.1} parent=0 // pred_check
    _
  $region23: #{cat_dot_prod_attention.1} parent=0 // pred_check_branch
    %727 = sbr.rel (0) target = $region25
  $region24: #{cat_dot_prod_attention.1} parent=0 // pred_region
    _
  $region25: #{cat_dot_prod_attention.1} parent=0 // pred_fallthru
    _
  // Predicated region
  $region26: #{cat_dot_prod_attention.1} parent=0 // pred_check
    _
  $region27: #{cat_dot_prod_attention.1} parent=0 // pred_check_branch
    %729 = sbr.rel (0) target = $region29
  $region28: #{cat_dot_prod_attention.1} parent=0 // pred_region
    _
  $region29: #{cat_dot_prod_attention.1} parent=0 // pred_fallthru
    _
  // Predicated region
  $region30: #{cat_dot_prod_attention.1} parent=0 // pred_check
    _
  $region31: #{cat_dot_prod_attention.1} parent=0 // pred_check_branch
    %731 = sbr.rel (0) target = $region33
  $region32: #{cat_dot_prod_attention.1} parent=0 // pred_region
    _
  $region33: #{cat_dot_prod_attention.1} parent=0 // pred_fallthru
    _

</llo_original>
